<compile_context>
chip_gen: v7x
topology: tpu7x:2x2x1
jax: 0.10.0
libtpu: 0.0.40
codegen_flags: <defaults>
</compile_context>

<pallas_src>
import math
from functools import partial

import jax
import jax.numpy as jnp
from jax.experimental import pallas as pl
from jax.experimental.pallas import tpu as pltpu


def _mil_kernel(x_ref, wqkv_ref, bqkv_ref, wo_ref, bo_ref, wbar_ref, bbar_ref,
                out_ref, *, num_heads):
    H = num_heads
    x = x_ref[...]                                   # (N, E), MXU operand dtype
    cdt = x.dtype                                    # f32, or bf16 on v5e/v6e/v7x
    N, E = x.shape
    Dh = E // H

    # ---- single lane-dense QKV projection -----------------------------------
    # wqkv columns = [Wq^T (pre-scaled by 1/sqrt(Dh)) | Wk^T | Wv^T]; one
    # (N, E) x (E, 3E) matmul with contraction depth E.
    qkv = jnp.dot(x, wqkv_ref[...], preferred_element_type=jnp.float32)
    qkv = qkv + bqkv_ref[...]                        # (N, 3E) f32

    # Head split: static lane slices (fully lane-aligned when Dh % 128 == 0)
    # stacked on a new leading head axis -> (H, N, Dh) per q/k/v.
    def heads(base):
        return jnp.stack(
            [qkv[:, base + h * Dh: base + (h + 1) * Dh] for h in range(H)], axis=0)

    q, k, v = heads(0), heads(E), heads(2 * E)

    # ---- head-batched attention (heads on the batch axis) --------------------
    s = jnp.einsum("hnd,hmd->hnm", q.astype(cdt), k.astype(cdt),
                   preferred_element_type=jnp.float32)            # (H, N, N)
    s = s - jnp.max(s, axis=-1, keepdims=True)
    p = jnp.exp(s)
    inv = pl.reciprocal(jnp.sum(p, axis=-1, keepdims=True), approx=True)  # EUP
    p = p * inv                                                    # per-head softmax
    a_avg = jnp.sum(p, axis=0) * (1.0 / H)                         # (N, N) head-avg

    o = jnp.einsum("hnm,hmd->hnd", p.astype(cdt), v.astype(cdt),
                   preferred_element_type=jnp.float32)             # (H, N, Dh)

    # ---- output projection: concat heads on lanes, ONE depth-E matmul --------
    o_flat = jnp.concatenate([o[h] for h in range(H)], axis=-1)    # (N, E) f32
    attn_out = jnp.dot(o_flat.astype(cdt), wo_ref[...],
                       preferred_element_type=jnp.float32) + bo_ref[...]   # (N, E)

    # ---- Conv1d tail (channel mean folded into weights in the wrapper) -------
    # pool = A_avg @ attn_out is never materialized: contract w_bar first.
    u = jnp.dot(wbar_ref[...], a_avg, preferred_element_type=jnp.float32)  # (3, N)
    r = jnp.dot(u, attn_out, preferred_element_type=jnp.float32)           # (3, E)

    # 3-tap "same" conv along E: out[l] = r1[l] + r0[l-1] + r2[l+1] + b_bar.
    if E % 128 == 0:
        # Lane-aligned production path: circular XLU roll + mask of the wrapped
        # lane (pltpu.roll shifts must be non-negative).
        lane = jax.lax.broadcasted_iota(jnp.int32, (1, E), 1)
        r0s = jnp.where(lane == 0, 0.0,
                        pltpu.roll(r[0:1, :], shift=1, axis=1))          # r0[l-1]
        r2s = jnp.where(lane == E - 1, 0.0,
                        pltpu.roll(r[2:3, :], shift=E - 1, axis=1))      # r2[l+1]
    else:
        # Small / unaligned E (toy config): zero-padded lane shifts via concat.
        zcol = jnp.zeros((1, 1), jnp.float32)
        r0s = jnp.concatenate([zcol, r[0:1, :E - 1]], axis=1)            # r0[l-1]
        r2s = jnp.concatenate([r[2:3, 1:], zcol], axis=1)                # r2[l+1]

    out_ref[...] = r[1:2, :] + r0s + r2s + bbar_ref[0]             # (1, E)


def _build_operands(params, embed_dim, num_heads, mxu_dtype):
    E, H = embed_dim, num_heads
    Dh = E // H
    f32 = jnp.float32
    scale = 1.0 / math.sqrt(Dh)

    # Fused QKV weight (E, 3E); softmax scale folded into q columns / bq so the
    # kernel never scales the (H, N, N) score matrix.
    wqkv = jnp.concatenate([params["Wq"].T * scale,
                            params["Wk"].T,
                            params["Wv"].T], axis=1).astype(mxu_dtype)     # (E, 3E)
    bqkv = jnp.concatenate([params["bq"] * scale,
                            params["bk"],
                            params["bv"]]).reshape(1, 3 * E).astype(f32)   # (1, 3E)
    wo = params["Wo"].T.astype(mxu_dtype)                                  # (E, E)
    bo = params["bo"].reshape(1, E).astype(f32)                            # (1, E)

    # Conv1d channel mean folded into the weights (linear in the channels).
    wbar = jnp.mean(params["conv_w"], axis=0).T.astype(f32)                # (3, N)
    bbar = jnp.mean(params["conv_b"]).reshape(1).astype(f32)               # (1,)
    return wqkv, bqkv, wo, bo, wbar, bbar


def multihead_mil_aggregator_batched(xs, params, num_heads, *,
                                     mxu_dtype=jnp.float32):
    """Batch of MIL bags: xs (B, N, E) -> (B, 1, E)."""
    B, N, E = xs.shape
    H = num_heads
    assert E % H == 0
    cout, n_in, K = params["conv_w"].shape
    assert K == 3 and n_in == N

    wqkv, bqkv, wo, bo, wbar, bbar = _build_operands(params, E, H, mxu_dtype)
    kernel = partial(_mil_kernel, num_heads=H)

    # TODO(synk): for production shapes (N in the thousands, E a multiple of
    # 128) add a flash-style query-row / kv grid with online softmax, an
    # explicit vmem_limit_bytes, and dimension_semantics=("parallel",
    # "parallel", "arbitrary") so the resident (H, N, N) buffers fit v7x's
    # 64 MiB VMEM and both of its TensorCores are used.
    return pl.pallas_call(
        kernel,
        grid=(B,),
        in_specs=[
            pl.BlockSpec((None, N, E), lambda b: (b, 0, 0)),       # per-bag x
            pl.BlockSpec((E, 3 * E), lambda b: (0, 0)),            # fused QKV weight
            pl.BlockSpec((1, 3 * E), lambda b: (0, 0)),            # fused QKV bias
            pl.BlockSpec((E, E), lambda b: (0, 0)),                # Wo^T
            pl.BlockSpec((1, E), lambda b: (0, 0)),                # bo
            pl.BlockSpec((3, N), lambda b: (0, 0)),                # channel-mean conv w
            pl.BlockSpec(memory_space=pltpu.MemorySpace.SMEM),     # channel-mean conv b
        ],
        out_specs=pl.BlockSpec((None, 1, E), lambda b: (b, 0, 0)),
        out_shape=jax.ShapeDtypeStruct((B, 1, E), jnp.float32),
        compiler_params=pltpu.CompilerParams(
            dimension_semantics=("parallel",)),                    # megacore on v7x
    )(xs.astype(mxu_dtype), wqkv, bqkv, wo, bo, wbar, bbar)


def multihead_mil_aggregator(x, params, num_heads, *, mxu_dtype=jnp.float32):
    """Single-bag forward matching the PyTorch module: (N, E) -> (1, E)."""
    return multihead_mil_aggregator_batched(
        x[None], params, num_heads, mxu_dtype=mxu_dtype)[0]


def reference_forward(x, params, num_heads):
    """Pure-JAX mirror of the PyTorch forward (for correctness check)."""
    N, E = x.shape
    H, Dh = num_heads, E // num_heads
    q = x @ params["Wq"].T + params["bq"]
    k = x @ params["Wk"].T + params["bk"]
    v = x @ params["Wv"].T + params["bv"]
    qh = q.reshape(N, H, Dh).transpose(1, 0, 2)
    kh = k.reshape(N, H, Dh).transpose(1, 0, 2)
    vh = v.reshape(N, H, Dh).transpose(1, 0, 2)
    s = jnp.einsum("hnd,hmd->hnm", qh, kh) / math.sqrt(Dh)
    p = jax.nn.softmax(s, axis=-1)                                   # (H, N, N)
    oh = jnp.einsum("hnm,hmd->hnd", p, vh)
    attn_out = oh.transpose(1, 0, 2).reshape(N, E) @ params["Wo"].T + params["bo"]
    w_avg = p.mean(axis=0)                                           # head-avg weights
    pool = w_avg @ attn_out                                          # (N, E)
    padded = jnp.pad(pool, ((0, 0), (1, 1)))
    conv = sum(params["conv_w"][:, :, kk] @ padded[:, kk:kk + E] for kk in range(3))
    conv = conv + params["conv_b"][:, None]
    return conv.mean(axis=0, keepdims=True)


if __name__ == "__main__":
    # Small synthetic config: num_patches=8, embed_dim=32, heads=4, conv_out=16.
    N, E, H, COUT, K = 8, 32, 4, 16, 3
    B = 3                                            # bags per batched launch

    key = jax.random.PRNGKey(0)
    keys = jax.random.split(key, 12)
    sc = 0.1
    params = {
        "Wq": sc * jax.random.normal(keys[0], (E, E), jnp.float32),
        "Wk": sc * jax.random.normal(keys[1], (E, E), jnp.float32),
        "Wv": sc * jax.random.normal(keys[2], (E, E), jnp.float32),
        "bq": sc * jax.random.normal(keys[3], (E,), jnp.float32),
        "bk": sc * jax.random.normal(keys[4], (E,), jnp.float32),
        "bv": sc * jax.random.normal(keys[5], (E,), jnp.float32),
        "Wo": sc * jax.random.normal(keys[6], (E, E), jnp.float32),
        "bo": sc * jax.random.normal(keys[7], (E,), jnp.float32),
        "conv_w": sc * jax.random.normal(keys[8], (COUT, N, K), jnp.float32),
        "conv_b": sc * jax.random.normal(keys[9], (COUT,), jnp.float32),
    }
    x = jax.random.normal(keys[10], (N, E), jnp.float32)
    xs = jax.random.normal(keys[11], (B, N, E), jnp.float32)

    ref = reference_forward(x, params, num_heads=H)

    # f32 MXU operands (approx-reciprocal softmax denominator -> loose-ish tol).
    out_f32 = jax.block_until_ready(multihead_mil_aggregator(x, params, num_heads=H))
    assert out_f32.shape == (1, E)
    assert jnp.allclose(out_f32, ref, rtol=2e-3, atol=2e-3), (out_f32, ref)

    # Batched bags on a "parallel" grid axis (amortized launch, megacore on v7x).
    outs = jax.block_until_ready(
        multihead_mil_aggregator_batched(xs, params, num_heads=H))
    assert outs.shape == (B, 1, E)
    for b in range(B):
        refb = reference_forward(xs[b], params, num_heads=H)
        assert jnp.allclose(outs[b], refb, rtol=2e-3, atol=2e-3), (b, outs[b], refb)

    # bf16 MXU operands (recommended on v5e/v6e/v7x); accumulation stays f32.
    out_bf16 = jax.block_until_ready(
        multihead_mil_aggregator(x, params, num_heads=H, mxu_dtype=jnp.bfloat16))
    assert out_bf16.shape == (1, E)
    assert jnp.allclose(out_bf16, ref, rtol=3e-2, atol=3e-2), (out_bf16, ref)

    print("KERNEL_OK")
</pallas_src>

<mosaic_0001>
module attributes {stable_mosaic.version = 11 : i64} {
  func.func @_mil_kernel(%arg0: i32, %arg1: memref<1x8x32xf32, #tpu.memory_space<vmem>>, %arg2: memref<32x96xf32, #tpu.memory_space<vmem>>, %arg3: memref<1x96xf32, #tpu.memory_space<vmem>>, %arg4: memref<32x32xf32, #tpu.memory_space<vmem>>, %arg5: memref<1x32xf32, #tpu.memory_space<vmem>>, %arg6: memref<3x8xf32, #tpu.memory_space<vmem>>, %arg7: memref<1xf32, #tpu.memory_space<smem>>, %arg8: memref<1x1x32xf32, #tpu.memory_space<vmem>>) attributes {dimension_semantics = [#tpu.dimension_semantics<parallel>], iteration_bounds = array<i64: 1>, scalar_prefetch = 0 : i64, scratch_operands = 0 : i64, tpu.core_type = #tpu.core_type<tc>, window_params = [{transform_indices = @transform_0, window_bounds = array<i64: 1, 8, 32>}, {pipeline_mode = #tpu.pipeline_mode<synchronous>, transform_indices = @transform_1, window_bounds = array<i64: 32, 96>}, {pipeline_mode = #tpu.pipeline_mode<synchronous>, transform_indices = @transform_2, window_bounds = array<i64: 1, 96>}, {pipeline_mode = #tpu.pipeline_mode<synchronous>, transform_indices = @transform_3, window_bounds = array<i64: 32, 32>}, {pipeline_mode = #tpu.pipeline_mode<synchronous>, transform_indices = @transform_4, window_bounds = array<i64: 1, 32>}, {pipeline_mode = #tpu.pipeline_mode<synchronous>, transform_indices = @transform_5, window_bounds = array<i64: 3, 8>}, {transform_indices = @transform_6, window_bounds = array<i64: 1>}, {transform_indices = @transform_7, window_bounds = array<i64: 1, 1, 32>}]} {
    %c0 = arith.constant 0 : index
    %c0_0 = arith.constant 0 : index
    %c0_1 = arith.constant 0 : index
    %0 = vector.load %arg1[%c0, %c0_0, %c0_1] : memref<1x8x32xf32, #tpu.memory_space<vmem>>, vector<1x8x32xf32>
    %1 = vector.shape_cast %0 : vector<1x8x32xf32> to vector<8x32xf32>
    %c0_2 = arith.constant 0 : index
    %c0_3 = arith.constant 0 : index
    %2 = vector.load %arg2[%c0_2, %c0_3] : memref<32x96xf32, #tpu.memory_space<vmem>>, vector<32x96xf32>
    %cst = arith.constant dense<0.000000e+00> : vector<8x96xf32>
    %3 = tpu.matmul %1, %2, %cst {dimension_numbers = #tpu.dot_dimension_numbers<[1], [0], [0], [1], [0, 0, 1, 1], [], []>} : vector<8x32xf32>, vector<32x96xf32>, vector<8x96xf32> -> vector<8x96xf32>
    %c0_4 = arith.constant 0 : index
    %c0_5 = arith.constant 0 : index
    %4 = vector.load %arg3[%c0_4, %c0_5] : memref<1x96xf32, #tpu.memory_space<vmem>>, vector<1x96xf32>
    %5 = vector.broadcast %4 : vector<1x96xf32> to vector<8x96xf32>
    %6 = arith.addf %3, %5 : vector<8x96xf32>
    %7 = vector.extract_strided_slice %6 {offsets = [0, 0], sizes = [8, 8], strides = [1, 1]} : vector<8x96xf32> to vector<8x8xf32>
    %8 = vector.extract_strided_slice %6 {offsets = [0, 8], sizes = [8, 8], strides = [1, 1]} : vector<8x96xf32> to vector<8x8xf32>
    %9 = vector.extract_strided_slice %6 {offsets = [0, 16], sizes = [8, 8], strides = [1, 1]} : vector<8x96xf32> to vector<8x8xf32>
    %10 = vector.extract_strided_slice %6 {offsets = [0, 24], sizes = [8, 8], strides = [1, 1]} : vector<8x96xf32> to vector<8x8xf32>
    %11 = vector.shape_cast %7 : vector<8x8xf32> to vector<1x8x8xf32>
    %12 = vector.shape_cast %8 : vector<8x8xf32> to vector<1x8x8xf32>
    %13 = vector.shape_cast %9 : vector<8x8xf32> to vector<1x8x8xf32>
    %14 = vector.shape_cast %10 : vector<8x8xf32> to vector<1x8x8xf32>
    %15 = tpu.concatenate %11, %12, %13, %14 in 0 : vector<1x8x8xf32>, vector<1x8x8xf32>, vector<1x8x8xf32>, vector<1x8x8xf32> -> vector<4x8x8xf32>
    %16 = vector.extract_strided_slice %6 {offsets = [0, 32], sizes = [8, 8], strides = [1, 1]} : vector<8x96xf32> to vector<8x8xf32>
    %17 = vector.extract_strided_slice %6 {offsets = [0, 40], sizes = [8, 8], strides = [1, 1]} : vector<8x96xf32> to vector<8x8xf32>
    %18 = vector.extract_strided_slice %6 {offsets = [0, 48], sizes = [8, 8], strides = [1, 1]} : vector<8x96xf32> to vector<8x8xf32>
    %19 = vector.extract_strided_slice %6 {offsets = [0, 56], sizes = [8, 8], strides = [1, 1]} : vector<8x96xf32> to vector<8x8xf32>
    %20 = vector.shape_cast %16 : vector<8x8xf32> to vector<1x8x8xf32>
    %21 = vector.shape_cast %17 : vector<8x8xf32> to vector<1x8x8xf32>
    %22 = vector.shape_cast %18 : vector<8x8xf32> to vector<1x8x8xf32>
    %23 = vector.shape_cast %19 : vector<8x8xf32> to vector<1x8x8xf32>
    %24 = tpu.concatenate %20, %21, %22, %23 in 0 : vector<1x8x8xf32>, vector<1x8x8xf32>, vector<1x8x8xf32>, vector<1x8x8xf32> -> vector<4x8x8xf32>
    %25 = vector.extract_strided_slice %6 {offsets = [0, 64], sizes = [8, 8], strides = [1, 1]} : vector<8x96xf32> to vector<8x8xf32>
    %26 = vector.extract_strided_slice %6 {offsets = [0, 72], sizes = [8, 8], strides = [1, 1]} : vector<8x96xf32> to vector<8x8xf32>
    %27 = vector.extract_strided_slice %6 {offsets = [0, 80], sizes = [8, 8], strides = [1, 1]} : vector<8x96xf32> to vector<8x8xf32>
    %28 = vector.extract_strided_slice %6 {offsets = [0, 88], sizes = [8, 8], strides = [1, 1]} : vector<8x96xf32> to vector<8x8xf32>
    %29 = vector.shape_cast %25 : vector<8x8xf32> to vector<1x8x8xf32>
    %30 = vector.shape_cast %26 : vector<8x8xf32> to vector<1x8x8xf32>
    %31 = vector.shape_cast %27 : vector<8x8xf32> to vector<1x8x8xf32>
    %32 = vector.shape_cast %28 : vector<8x8xf32> to vector<1x8x8xf32>
    %33 = tpu.concatenate %29, %30, %31, %32 in 0 : vector<1x8x8xf32>, vector<1x8x8xf32>, vector<1x8x8xf32>, vector<1x8x8xf32> -> vector<4x8x8xf32>
    "tpu.trace_start"() <{level = 10 : i32, message = "hnd,hmd->hnm"}> : () -> ()
    %cst_6 = arith.constant dense<0.000000e+00> : vector<4x8x8xf32>
    %34 = tpu.matmul %15, %24, %cst_6 {dimension_numbers = #tpu.dot_dimension_numbers<[2], [2], [1], [1], [0, 0, 0, 1, 1, 1], [0], [0]>} : vector<4x8x8xf32>, vector<4x8x8xf32>, vector<4x8x8xf32> -> vector<4x8x8xf32>
    "tpu.trace_stop"() : () -> ()
    %cst_7 = arith.constant dense<0xFF800000> : vector<4x8xf32>
    %35 = vector.multi_reduction <maximumf>, %34, %cst_7 [2] : vector<4x8x8xf32> to vector<4x8xf32>
    %36 = vector.shape_cast %35 : vector<4x8xf32> to vector<4x8x1xf32>
    %37 = vector.broadcast %36 : vector<4x8x1xf32> to vector<4x8x8xf32>
    %38 = arith.subf %34, %37 : vector<4x8x8xf32>
    %39 = math.exp %38 : vector<4x8x8xf32>
    %cst_8 = arith.constant dense<0.000000e+00> : vector<4x8xf32>
    %40 = vector.multi_reduction <add>, %39, %cst_8 [2] : vector<4x8x8xf32> to vector<4x8xf32>
    %41 = vector.shape_cast %40 : vector<4x8xf32> to vector<4x8x1xf32>
    %42 = tpu.reciprocal %41 {approx = true} : vector<4x8x1xf32> -> vector<4x8x1xf32>
    %43 = vector.broadcast %42 : vector<4x8x1xf32> to vector<4x8x8xf32>
    %44 = arith.mulf %39, %43 : vector<4x8x8xf32>
    %cst_9 = arith.constant dense<0.000000e+00> : vector<8x8xf32>
    %45 = vector.multi_reduction <add>, %44, %cst_9 [0] : vector<4x8x8xf32> to vector<8x8xf32>
    %cst_10 = arith.constant 2.500000e-01 : f32
    %46 = vector.broadcast %cst_10 : f32 to vector<8x8xf32>
    %47 = arith.mulf %45, %46 : vector<8x8xf32>
    "tpu.trace_start"() <{level = 10 : i32, message = "hnm,hmd->hnd"}> : () -> ()
    %cst_11 = arith.constant dense<0.000000e+00> : vector<4x8x8xf32>
    %48 = tpu.matmul %44, %33, %cst_11 {dimension_numbers = #tpu.dot_dimension_numbers<[2], [1], [1], [2], [0, 0, 0, 1, 1, 2], [0], [0]>} : vector<4x8x8xf32>, vector<4x8x8xf32>, vector<4x8x8xf32> -> vector<4x8x8xf32>
    "tpu.trace_stop"() : () -> ()
    %49 = vector.extract_strided_slice %48 {offsets = [0, 0, 0], sizes = [1, 8, 8], strides = [1, 1, 1]} : vector<4x8x8xf32> to vector<1x8x8xf32>
    %50 = vector.shape_cast %49 : vector<1x8x8xf32> to vector<8x8xf32>
    %51 = vector.extract_strided_slice %48 {offsets = [1, 0, 0], sizes = [1, 8, 8], strides = [1, 1, 1]} : vector<4x8x8xf32> to vector<1x8x8xf32>
    %52 = vector.shape_cast %51 : vector<1x8x8xf32> to vector<8x8xf32>
    %53 = vector.extract_strided_slice %48 {offsets = [2, 0, 0], sizes = [1, 8, 8], strides = [1, 1, 1]} : vector<4x8x8xf32> to vector<1x8x8xf32>
    %54 = vector.shape_cast %53 : vector<1x8x8xf32> to vector<8x8xf32>
    %55 = vector.extract_strided_slice %48 {offsets = [3, 0, 0], sizes = [1, 8, 8], strides = [1, 1, 1]} : vector<4x8x8xf32> to vector<1x8x8xf32>
    %56 = vector.shape_cast %55 : vector<1x8x8xf32> to vector<8x8xf32>
    %57 = tpu.concatenate %50, %52, %54, %56 in 1 : vector<8x8xf32>, vector<8x8xf32>, vector<8x8xf32>, vector<8x8xf32> -> vector<8x32xf32>
    %c0_12 = arith.constant 0 : index
    %c0_13 = arith.constant 0 : index
    %58 = vector.load %arg4[%c0_12, %c0_13] : memref<32x32xf32, #tpu.memory_space<vmem>>, vector<32x32xf32>
    %cst_14 = arith.constant dense<0.000000e+00> : vector<8x32xf32>
    %59 = tpu.matmul %57, %58, %cst_14 {dimension_numbers = #tpu.dot_dimension_numbers<[1], [0], [0], [1], [0, 0, 1, 1], [], []>} : vector<8x32xf32>, vector<32x32xf32>, vector<8x32xf32> -> vector<8x32xf32>
    %c0_15 = arith.constant 0 : index
    %c0_16 = arith.constant 0 : index
    %60 = vector.load %arg5[%c0_15, %c0_16] : memref<1x32xf32, #tpu.memory_space<vmem>>, vector<1x32xf32>
    %61 = vector.broadcast %60 : vector<1x32xf32> to vector<8x32xf32>
    %62 = arith.addf %59, %61 : vector<8x32xf32>
    %c0_17 = arith.constant 0 : index
    %c0_18 = arith.constant 0 : index
    %63 = vector.load %arg6[%c0_17, %c0_18] : memref<3x8xf32, #tpu.memory_space<vmem>>, vector<3x8xf32>
    %cst_19 = arith.constant dense<0.000000e+00> : vector<3x8xf32>
    %64 = tpu.matmul %63, %47, %cst_19 {dimension_numbers = #tpu.dot_dimension_numbers<[1], [0], [0], [1], [0, 0, 1, 1], [], []>} : vector<3x8xf32>, vector<8x8xf32>, vector<3x8xf32> -> vector<3x8xf32>
    %cst_20 = arith.constant dense<0.000000e+00> : vector<3x32xf32>
    %65 = tpu.matmul %64, %62, %cst_20 {dimension_numbers = #tpu.dot_dimension_numbers<[1], [0], [0], [1], [0, 0, 1, 1], [], []>} : vector<3x8xf32>, vector<8x32xf32>, vector<3x32xf32> -> vector<3x32xf32>
    %cst_21 = arith.constant 0.000000e+00 : f32
    %66 = vector.broadcast %cst_21 : f32 to vector<1x1xf32>
    %67 = vector.extract_strided_slice %65 {offsets = [0, 0], sizes = [1, 31], strides = [1, 1]} : vector<3x32xf32> to vector<1x31xf32>
    %68 = tpu.concatenate %66, %67 in 1 : vector<1x1xf32>, vector<1x31xf32> -> vector<1x32xf32>
    %69 = vector.extract_strided_slice %65 {offsets = [2, 1], sizes = [1, 31], strides = [1, 1]} : vector<3x32xf32> to vector<1x31xf32>
    %70 = tpu.concatenate %69, %66 in 1 : vector<1x31xf32>, vector<1x1xf32> -> vector<1x32xf32>
    %71 = vector.extract_strided_slice %65 {offsets = [1, 0], sizes = [1, 32], strides = [1, 1]} : vector<3x32xf32> to vector<1x32xf32>
    %72 = arith.addf %71, %68 : vector<1x32xf32>
    %73 = arith.addf %72, %70 : vector<1x32xf32>
    %c0_22 = arith.constant 0 : index
    %74 = memref.load %arg7[%c0_22] : memref<1xf32, #tpu.memory_space<smem>>
    %75 = vector.broadcast %74 : f32 to vector<1x32xf32>
    %76 = arith.addf %73, %75 : vector<1x32xf32>
    %c0_23 = arith.constant 0 : index
    %c0_24 = arith.constant 0 : index
    %c0_25 = arith.constant 0 : index
    %77 = vector.load %arg8[%c0_23, %c0_24, %c0_25] : memref<1x1x32xf32, #tpu.memory_space<vmem>>, vector<1x1x32xf32>
    %78 = vector.shape_cast %77 : vector<1x1x32xf32> to vector<1x32xf32>
    %79 = vector.shape_cast %76 : vector<1x32xf32> to vector<1x1x32xf32>
    tpu.vector_store %arg8[%c0_23, %c0_24, %c0_25], %79 {strides = array<i32>} : memref<1x1x32xf32, #tpu.memory_space<vmem>>, vector<1x1x32xf32>,
    return
  }
  func.func @transform_0(%arg0: i32) -> (i32, i32, i32) {
    %c0_i32 = arith.constant 0 : i32
    %c0_i32_0 = arith.constant 0 : i32
    %c0_i32_1 = arith.constant 0 : i32
    return %arg0, %c0_i32, %c0_i32_0 : i32, i32, i32
  }
  func.func @transform_1(%arg0: i32) -> (i32, i32) {
    %c0_i32 = arith.constant 0 : i32
    %c0_i32_0 = arith.constant 0 : i32
    %c0_i32_1 = arith.constant 0 : i32
    return %c0_i32, %c0_i32_0 : i32, i32
  }
  func.func @transform_2(%arg0: i32) -> (i32, i32) {
    %c0_i32 = arith.constant 0 : i32
    %c0_i32_0 = arith.constant 0 : i32
    %c0_i32_1 = arith.constant 0 : i32
    return %c0_i32, %c0_i32_0 : i32, i32
  }
  func.func @transform_3(%arg0: i32) -> (i32, i32) {
    %c0_i32 = arith.constant 0 : i32
    %c0_i32_0 = arith.constant 0 : i32
    %c0_i32_1 = arith.constant 0 : i32
    return %c0_i32, %c0_i32_0 : i32, i32
  }
  func.func @transform_4(%arg0: i32) -> (i32, i32) {
    %c0_i32 = arith.constant 0 : i32
    %c0_i32_0 = arith.constant 0 : i32
    %c0_i32_1 = arith.constant 0 : i32
    return %c0_i32, %c0_i32_0 : i32, i32
  }
  func.func @transform_5(%arg0: i32) -> (i32, i32) {
    %c0_i32 = arith.constant 0 : i32
    %c0_i32_0 = arith.constant 0 : i32
    %c0_i32_1 = arith.constant 0 : i32
    return %c0_i32, %c0_i32_0 : i32, i32
  }
  func.func @transform_6(%arg0: i32) -> i32 {
    %c0_i32 = arith.constant 0 : i32
    %c0_i32_0 = arith.constant 0 : i32
    return %c0_i32 : i32
  }
  func.func @transform_7(%arg0: i32) -> (i32, i32, i32) {
    %c0_i32 = arith.constant 0 : i32
    %c0_i32_0 = arith.constant 0 : i32
    %c0_i32_1 = arith.constant 0 : i32
    return %arg0, %c0_i32, %c0_i32_0 : i32, i32, i32
  }
}

</mosaic_0001>

<llo_original>
// kernel: tpu_custom_call.1
$region0: #{tpu_custom_call.1}
  #allocation0 [shape = 'u32[]', space=smem, size = 0x4, offset = 0x4, fixed_abs, tag = 'smem constant byte address 0x4 - core index']
  #allocation1 [shape = 'u32[144,128]{1,0:T(1,128)}', space=vmem, size = 0x12000, scoped, tag = 'internal scratch']
  #allocation2 [shape = 'f32[1]{0:T(128)S(6)}', space=smem, size = 0x200, scoped, tag = 'scoped memory for tpu_custom_call.1']
  %s0 = inlined_call_operand.hbm [shape: f32[1,8,32], index: 0, kind: input, shape index: {}]
  %s1 = inlined_call_operand.hbm [shape: f32[32,96], index: 1, kind: input, shape index: {}]
  %s2 = inlined_call_operand.vmem [shape: f32[1,96], index: 2, kind: input, shape index: {}]
  %s3 = inlined_call_operand.hbm [shape: f32[32,32], index: 3, kind: input, shape index: {}]
  %s4 = inlined_call_operand.vmem [shape: f32[1,32], index: 4, kind: input, shape index: {}]
  %s5 = inlined_call_operand.vmem [shape: f32[3,8], index: 5, kind: input, shape index: {}]
  %s6 = inlined_call_operand.<no memory space> [shape: f32[1], index: 6, kind: input, shape index: {}]
  %s7 = inlined_call_operand.hbm [shape: f32[1,1,32], index: 7, kind: output, shape index: {}]
  %s8 = sld [smem:[#allocation0]]
  $region50: #{tpu_custom_call.1} parent=0
    _
  %s10 = ssub.s32 1, %s8
  %s11 = scalar_select 0, %s10, %s8
  %12 = sst [smem:[#allocation2]] %s6
  $region1: #{tpu_custom_call.1} parent=0
    #allocation3 [shape = 'u8[4096]{0}', space=vmem, size = 0x1000, scoped, tag = 'input window, operand 0, single buffered']
    #allocation4 [shape = 's32[1]{0}', space=sflag, size = 0x4, scoped, tag = 'scoped memory for tpu_custom_call.1']
    #allocation5 [shape = 's32[1]{0}', space=sflag, size = 0x4, scoped, tag = 'scoped memory for tpu_custom_call.1']
    #allocation6 [shape = 'u8[16384]{0}', space=vmem, size = 0x4000, scoped, tag = 'input window, operand 1, single buffered']
    #allocation7 [shape = 's32[1]{0}', space=sflag, size = 0x4, scoped, tag = 'scoped memory for tpu_custom_call.1']
    #allocation8 [shape = 'u8[16384]{0}', space=vmem, size = 0x4000, scoped, tag = 'input window, operand 3, single buffered']
    #allocation9 [shape = 'u8[512]{0}', space=vmem, size = 0x400, scoped, tag = 'output window, operand 0, single buffered']
    %13 = vsyncpa [#allocation4], 0
    %14 = vsyncpa [#allocation7], 0
    %15 = vsyncpa [#allocation5], 0
    // Predicated region
    $region2: #{tpu_custom_call.1} parent=1 // pred_check
      _
    $region3: #{tpu_custom_call.1} parent=1 // pred_check_branch
      %17 = sbr.rel (0) target = $region5
    $region4: #{tpu_custom_call.1} parent=1 // pred_region
      %s19 = ssub.s32 128, 128
      %20 = vsyncadd [#allocation4], %s19
      %s22 = sshll.u32 [#allocation3], 4
      %s23 = int_to_ptr.vmem [resolvable:$true] %s22
      %25 = dma.hbm_to_vmem [thread:$0]  %s0, 128, %s23, [#allocation4]
    $region5: #{tpu_custom_call.1} parent=1 // pred_fallthru
      _
    // Predicated region
    $region6: #{tpu_custom_call.1} parent=1 // pred_check
      _
    $region7: #{tpu_custom_call.1} parent=1 // pred_check_branch
      %27 = sbr.rel (0) target = $region9
    $region8: #{tpu_custom_call.1} parent=1 // pred_region
      %s29 = ssub.s32 512, 512
      %30 = vsyncadd [#allocation7], %s29
      %s31 = sshll.u32 [#allocation6], 4
      %s32 = int_to_ptr.vmem [resolvable:$true] %s31
      %37 = dma.hbm_to_vmem [thread:$0]  %s1, 512, %s32, [#allocation7], 128, 128, 8
    $region9: #{tpu_custom_call.1} parent=1 // pred_fallthru
      _
    // Predicated region
    $region10: #{tpu_custom_call.1} parent=1 // pred_check
      _
    $region11: #{tpu_custom_call.1} parent=1 // pred_check_branch
      %39 = sbr.rel (0) target = $region13
    $region12: #{tpu_custom_call.1} parent=1 // pred_region
      _
    $region13: #{tpu_custom_call.1} parent=1 // pred_fallthru
      _
    // Predicated region
    $region14: #{tpu_custom_call.1} parent=1 // pred_check
      _
    $region15: #{tpu_custom_call.1} parent=1 // pred_check_branch
      %41 = sbr.rel (0) target = $region17
    $region16: #{tpu_custom_call.1} parent=1 // pred_region
      %s43 = ssub.s32 512, 512
      %44 = vsyncadd [#allocation7], %s43
      %s45 = sshll.u32 [#allocation8], 4
      %s46 = int_to_ptr.vmem [resolvable:$true] %s45
      %51 = dma.hbm_to_vmem [thread:$0]  %s3, 512, %s46, [#allocation7], 128, 128, 8
    $region17: #{tpu_custom_call.1} parent=1 // pred_fallthru
      _
    // Predicated region
    $region18: #{tpu_custom_call.1} parent=1 // pred_check
      _
    $region19: #{tpu_custom_call.1} parent=1 // pred_check_branch
      %53 = sbr.rel (0) target = $region21
    $region20: #{tpu_custom_call.1} parent=1 // pred_region
      _
    $region21: #{tpu_custom_call.1} parent=1 // pred_fallthru
      _
    // Predicated region
    $region22: #{tpu_custom_call.1} parent=1 // pred_check
      _
    $region23: #{tpu_custom_call.1} parent=1 // pred_check_branch
      %55 = sbr.rel (0) target = $region25
    $region24: #{tpu_custom_call.1} parent=1 // pred_region
      _
    $region25: #{tpu_custom_call.1} parent=1 // pred_fallthru
      _
    // Predicated region
    $region26: #{tpu_custom_call.1} parent=1 // pred_check
      _
    $region27: #{tpu_custom_call.1} parent=1 // pred_check_branch
      %57 = sbr.rel (0) target = $region29
    $region28: #{tpu_custom_call.1} parent=1 // pred_region
      _
    $region29: #{tpu_custom_call.1} parent=1 // pred_fallthru
      _
    // Predicated region
    $region30: #{tpu_custom_call.1} parent=1 // pred_check
      _
    $region31: #{tpu_custom_call.1} parent=1 // pred_check_branch
      %59 = sbr.rel (0) target = $region33
    $region32: #{tpu_custom_call.1} parent=1 // pred_region
      %60 = dma.done [#allocation4], 128
    $region33: #{tpu_custom_call.1} parent=1 // pred_fallthru
      _
    // Predicated region
    $region34: #{tpu_custom_call.1} parent=1 // pred_check
      _
    $region35: #{tpu_custom_call.1} parent=1 // pred_check_branch
      %62 = sbr.rel (0) target = $region37
    $region36: #{tpu_custom_call.1} parent=1 // pred_region
      %63 = dma.done [#allocation7], 512
    $region37: #{tpu_custom_call.1} parent=1 // pred_fallthru
      _
    // Predicated region
    $region38: #{tpu_custom_call.1} parent=1 // pred_check
      _
    $region39: #{tpu_custom_call.1} parent=1 // pred_check_branch
      %65 = sbr.rel (0) target = $region41
    $region40: #{tpu_custom_call.1} parent=1 // pred_region
      %66 = dma.done [#allocation7], 512
    $region41: #{tpu_custom_call.1} parent=1 // pred_fallthru
      _
    %v67 = vld [vmem:[#allocation3] sm:$0xff]
    %v68 = vld [vmem:[#allocation6] sm:$0xff]
    %v69 = vld [vmem:[#allocation6 + $0x8] sm:$0xff]
    %v70 = vld [vmem:[#allocation6 + $0x10] sm:$0xff]
    %v71 = vld [vmem:[#allocation6 + $0x18] sm:$0xff]
    %v72 = vld [vmem:[%s2] sm:$0x1]
    %v74 = vlaneseq
    %v75 = vshrl.u32 %v74, 7
    %v76 = vsub.s32 0, %v75
    %v77 = vrot.slane %v72, %v76
    %vm79 = vcmask 261120
    %v81 = vsel %vm79, %v67, 0
    %83 = vmatprep.subr.mxu0 0.0
    %84 = vmatpush1.msra.mxu0 %v68
    %85 = vmatprep.subr.mxu0 0.0
    %86 = vmatpush1.msra.mxu0 %v69
    %87 = vmatprep.subr.mxu0 0.0
    %88 = vmatpush1.msra.mxu0 %v70
    %89 = vmatprep.subr.mxu0 0.0
    %90 = vmatpush1.msra.mxu0 %v71
    %91 = vmatprep.subr.mxu0 0.0
    %92 = vmatpush1.msra.mxu0 0.0
    %93 = vmatprep.subr.mxu0 0.0
    %94 = vmatpush1.msra.mxu0 0.0
    %95 = vmatprep.subr.mxu0 0.0
    %96 = vmatpush1.msra.mxu0 0.0
    %97 = vmatprep.subr.mxu0 0.0
    %98 = vmatpush1.msra.mxu0 0.0
    %99 = vmatprep.subr.mxu0 0.0
    %100 = vmatpush1.msra.mxu0 0.0
    %101 = vmatprep.subr.mxu0 0.0
    %102 = vmatpush1.msra.mxu0 0.0
    %103 = vmatprep.subr.mxu0 0.0
    %104 = vmatpush1.msra.mxu0 0.0
    %105 = vmatprep.subr.mxu0 0.0
    %106 = vmatpush1.msra.mxu0 0.0
    %107 = vmatprep.subr.mxu0 0.0
    %108 = vmatpush1.msra.mxu0 0.0
    %109 = vmatprep.subr.mxu0 0.0
    %110 = vmatpush1.msra.mxu0 0.0
    %111 = vmatprep.subr.mxu0 0.0
    %112 = vmatpush1.msra.mxu0 0.0
    %113 = vmatprep.subr.mxu0 0.0
    %114 = vmatpush1.msra.mxu0 0.0
    %115 = vmatprep.subr.mxu0 0.0
    %116 = vmatpush1.msra.mxu0 0.0
    %117 = vmatprep.subr.mxu0 0.0
    %118 = vmatpush1.msra.mxu0 0.0
    %119 = vmatprep.subr.mxu0 0.0
    %120 = vmatpush1.msra.mxu0 0.0
    %121 = vmatprep.subr.mxu0 0.0
    %122 = vmatpush1.msra.mxu0 0.0
    %123 = vmatprep.subr.mxu0 0.0
    %124 = vmatpush1.msra.mxu0 0.0
    %125 = vmatprep.subr.mxu0 0.0
    %126 = vmatpush1.msra.mxu0 0.0
    %127 = vmatprep.subr.mxu0 0.0
    %128 = vmatpush1.msra.mxu0 0.0
    %129 = vmatprep.subr.mxu0 0.0
    %130 = vmatpush1.msra.mxu0 0.0
    %131 = vmatprep.subr.mxu0 0.0
    %132 = vmatpush1.msra.mxu0 0.0
    %133 = vmatprep.subr.mxu0 0.0
    %134 = vmatpush1.msra.mxu0 0.0
    %135 = vmatprep.subr.mxu0 0.0
    %136 = vmatpush1.msra.mxu0 0.0
    %137 = vmatprep.subr.mxu0 0.0
    %138 = vmatpush1.msra.mxu0 0.0
    %139 = vmatprep.subr.mxu0 0.0
    %140 = vmatpush1.msra.mxu0 0.0
    %141 = vmatprep.subr.mxu0 0.0
    %142 = vmatpush1.msra.mxu0 0.0
    %143 = vmatprep.subr.mxu0 0.0
    %144 = vmatpush1.msra.mxu0 0.0
    %145 = vmatprep.subr.mxu0 0.0
    %146 = vmatpush1.msra.mxu0 0.0
    %147 = vmatprep.mubr.f32.mxu0 0.0
    %148 = vmatmul.mubr.f32.gmra.mrb[0].mxu0 %v81
    %v149 = vpop.f32.mrb[0].mxu0
    %v150 = vadd.f32 %v77, %v149
    %v151 = vpop.f32.mrb[0].mxu0
    %152 = vdwg.mxu0
    %154 = vrot.lane.b32.xlu0 %v150, 120
    %v155 = vpop.permute.xlu0 %154
    %156 = vrot.lane.b32.xlu0 %v150, 112
    %v157 = vpop.permute.xlu0 %156
    %158 = vrot.lane.b32.xlu0 %v150, 104
    %v159 = vpop.permute.xlu0 %158
    %160 = vrot.lane.b32.xlu0 %v150, 96
    %v161 = vpop.permute.xlu0 %160
    %vm162 = vcmask 64512
    %v163 = vsel %vm162, %v150, 0
    %v165 = vsel %vm162, %v161, 0
    %167 = vmatprep.subr.mxu0 0.0
    %168 = vmatpush1.xpose.msra.mxu0 %v165
    %169 = vmatprep.subr.mxu0 0.0
    %170 = vmatpush1.xpose.msra.mxu0 0.0
    %171 = vmatprep.subr.mxu0 0.0
    %172 = vmatpush1.xpose.msra.mxu0 0.0
    %173 = vmatprep.subr.mxu0 0.0
    %174 = vmatpush1.xpose.msra.mxu0 0.0
    %175 = vmatprep.subr.mxu0 0.0
    %176 = vmatpush1.xpose.msra.mxu0 0.0
    %177 = vmatprep.subr.mxu0 0.0
    %178 = vmatpush1.xpose.msra.mxu0 0.0
    %179 = vmatprep.subr.mxu0 0.0
    %180 = vmatpush1.xpose.msra.mxu0 0.0
    %181 = vmatprep.subr.mxu0 0.0
    %182 = vmatpush1.xpose.msra.mxu0 0.0
    %183 = vmatprep.subr.mxu0 0.0
    %184 = vmatpush1.xpose.msra.mxu0 0.0
    %185 = vmatprep.subr.mxu0 0.0
    %186 = vmatpush1.xpose.msra.mxu0 0.0
    %187 = vmatprep.subr.mxu0 0.0
    %188 = vmatpush1.xpose.msra.mxu0 0.0
    %189 = vmatprep.subr.mxu0 0.0
    %190 = vmatpush1.xpose.msra.mxu0 0.0
    %191 = vmatprep.subr.mxu0 0.0
    %192 = vmatpush1.xpose.msra.mxu0 0.0
    %193 = vmatprep.subr.mxu0 0.0
    %194 = vmatpush1.xpose.msra.mxu0 0.0
    %195 = vmatprep.subr.mxu0 0.0
    %196 = vmatpush1.xpose.msra.mxu0 0.0
    %197 = vmatprep.subr.mxu0 0.0
    %198 = vmatpush1.xpose.msra.mxu0 0.0
    %199 = vmatprep.subr.mxu0 0.0
    %200 = vmatpush1.xpose.msra.mxu0 0.0
    %201 = vmatprep.subr.mxu0 0.0
    %202 = vmatpush1.xpose.msra.mxu0 0.0
    %203 = vmatprep.subr.mxu0 0.0
    %204 = vmatpush1.xpose.msra.mxu0 0.0
    %205 = vmatprep.subr.mxu0 0.0
    %206 = vmatpush1.xpose.msra.mxu0 0.0
    %207 = vmatprep.subr.mxu0 0.0
    %208 = vmatpush1.xpose.msra.mxu0 0.0
    %209 = vmatprep.subr.mxu0 0.0
    %210 = vmatpush1.xpose.msra.mxu0 0.0
    %211 = vmatprep.subr.mxu0 0.0
    %212 = vmatpush1.xpose.msra.mxu0 0.0
    %213 = vmatprep.subr.mxu0 0.0
    %214 = vmatpush1.xpose.msra.mxu0 0.0
    %215 = vmatprep.subr.mxu0 0.0
    %216 = vmatpush1.xpose.msra.mxu0 0.0
    %217 = vmatprep.subr.mxu0 0.0
    %218 = vmatpush1.xpose.msra.mxu0 0.0
    %219 = vmatprep.subr.mxu0 0.0
    %220 = vmatpush1.xpose.msra.mxu0 0.0
    %221 = vmatprep.subr.mxu0 0.0
    %222 = vmatpush1.xpose.msra.mxu0 0.0
    %223 = vmatprep.subr.mxu0 0.0
    %224 = vmatpush1.xpose.msra.mxu0 0.0
    %225 = vmatprep.subr.mxu0 0.0
    %226 = vmatpush1.xpose.msra.mxu0 0.0
    %227 = vmatprep.subr.mxu0 0.0
    %228 = vmatpush1.xpose.msra.mxu0 0.0
    %229 = vmatprep.subr.mxu0 0.0
    %230 = vmatpush1.xpose.msra.mxu0 0.0
    %231 = vmatprep.mubr.f32.mxu0 0.0
    %232 = vmatmul.mubr.f32.gmra.mrb[0].mxu0 %v163
    %v233 = vpop.f32.mrb[0].mxu0
    %v234 = vadd.f32 0.0, %v233
    %v235 = vpop.f32.mrb[0].mxu0
    %236 = vdwg.mxu0
    %237 = vrot.lane.b32.xlu0 %v155, 96
    %v238 = vpop.permute.xlu0 %237
    %v239 = vsel %vm162, %v155, 0
    %v241 = vsel %vm162, %v238, 0
    %243 = vmatprep.subr.mxu0 0.0
    %244 = vmatpush1.xpose.msra.mxu0 %v241
    %245 = vmatprep.subr.mxu0 0.0
    %246 = vmatpush1.xpose.msra.mxu0 0.0
    %247 = vmatprep.subr.mxu0 0.0
    %248 = vmatpush1.xpose.msra.mxu0 0.0
    %249 = vmatprep.subr.mxu0 0.0
    %250 = vmatpush1.xpose.msra.mxu0 0.0
    %251 = vmatprep.subr.mxu0 0.0
    %252 = vmatpush1.xpose.msra.mxu0 0.0
    %253 = vmatprep.subr.mxu0 0.0
    %254 = vmatpush1.xpose.msra.mxu0 0.0
    %255 = vmatprep.subr.mxu0 0.0
    %256 = vmatpush1.xpose.msra.mxu0 0.0
    %257 = vmatprep.subr.mxu0 0.0
    %258 = vmatpush1.xpose.msra.mxu0 0.0
    %259 = vmatprep.subr.mxu0 0.0
    %260 = vmatpush1.xpose.msra.mxu0 0.0
    %261 = vmatprep.subr.mxu0 0.0
    %262 = vmatpush1.xpose.msra.mxu0 0.0
    %263 = vmatprep.subr.mxu0 0.0
    %264 = vmatpush1.xpose.msra.mxu0 0.0
    %265 = vmatprep.subr.mxu0 0.0
    %266 = vmatpush1.xpose.msra.mxu0 0.0
    %267 = vmatprep.subr.mxu0 0.0
    %268 = vmatpush1.xpose.msra.mxu0 0.0
    %269 = vmatprep.subr.mxu0 0.0
    %270 = vmatpush1.xpose.msra.mxu0 0.0
    %271 = vmatprep.subr.mxu0 0.0
    %272 = vmatpush1.xpose.msra.mxu0 0.0
    %273 = vmatprep.subr.mxu0 0.0
    %274 = vmatpush1.xpose.msra.mxu0 0.0
    %275 = vmatprep.subr.mxu0 0.0
    %276 = vmatpush1.xpose.msra.mxu0 0.0
    %277 = vmatprep.subr.mxu0 0.0
    %278 = vmatpush1.xpose.msra.mxu0 0.0
    %279 = vmatprep.subr.mxu0 0.0
    %280 = vmatpush1.xpose.msra.mxu0 0.0
    %281 = vmatprep.subr.mxu0 0.0
    %282 = vmatpush1.xpose.msra.mxu0 0.0
    %283 = vmatprep.subr.mxu0 0.0
    %284 = vmatpush1.xpose.msra.mxu0 0.0
    %285 = vmatprep.subr.mxu0 0.0
    %286 = vmatpush1.xpose.msra.mxu0 0.0
    %287 = vmatprep.subr.mxu0 0.0
    %288 = vmatpush1.xpose.msra.mxu0 0.0
    %289 = vmatprep.subr.mxu0 0.0
    %290 = vmatpush1.xpose.msra.mxu0 0.0
    %291 = vmatprep.subr.mxu0 0.0
    %292 = vmatpush1.xpose.msra.mxu0 0.0
    %293 = vmatprep.subr.mxu0 0.0
    %294 = vmatpush1.xpose.msra.mxu0 0.0
    %295 = vmatprep.subr.mxu0 0.0
    %296 = vmatpush1.xpose.msra.mxu0 0.0
    %297 = vmatprep.subr.mxu0 0.0
    %298 = vmatpush1.xpose.msra.mxu0 0.0
    %299 = vmatprep.subr.mxu0 0.0
    %300 = vmatpush1.xpose.msra.mxu0 0.0
    %301 = vmatprep.subr.mxu0 0.0
    %302 = vmatpush1.xpose.msra.mxu0 0.0
    %303 = vmatprep.subr.mxu0 0.0
    %304 = vmatpush1.xpose.msra.mxu0 0.0
    %305 = vmatprep.subr.mxu0 0.0
    %306 = vmatpush1.xpose.msra.mxu0 0.0
    %307 = vmatprep.mubr.f32.mxu0 0.0
    %308 = vmatmul.mubr.f32.gmra.mrb[0].mxu0 %v239
    %v309 = vpop.f32.mrb[0].mxu0
    %v310 = vadd.f32 0.0, %v309
    %v311 = vpop.f32.mrb[0].mxu0
    %312 = vdwg.mxu0
    %313 = vrot.lane.b32.xlu0 %v157, 96
    %v314 = vpop.permute.xlu0 %313
    %v315 = vsel %vm162, %v157, 0
    %v317 = vsel %vm162, %v314, 0
    %319 = vmatprep.subr.mxu0 0.0
    %320 = vmatpush1.xpose.msra.mxu0 %v317
    %321 = vmatprep.subr.mxu0 0.0
    %322 = vmatpush1.xpose.msra.mxu0 0.0
    %323 = vmatprep.subr.mxu0 0.0
    %324 = vmatpush1.xpose.msra.mxu0 0.0
    %325 = vmatprep.subr.mxu0 0.0
    %326 = vmatpush1.xpose.msra.mxu0 0.0
    %327 = vmatprep.subr.mxu0 0.0
    %328 = vmatpush1.xpose.msra.mxu0 0.0
    %329 = vmatprep.subr.mxu0 0.0
    %330 = vmatpush1.xpose.msra.mxu0 0.0
    %331 = vmatprep.subr.mxu0 0.0
    %332 = vmatpush1.xpose.msra.mxu0 0.0
    %333 = vmatprep.subr.mxu0 0.0
    %334 = vmatpush1.xpose.msra.mxu0 0.0
    %335 = vmatprep.subr.mxu0 0.0
    %336 = vmatpush1.xpose.msra.mxu0 0.0
    %337 = vmatprep.subr.mxu0 0.0
    %338 = vmatpush1.xpose.msra.mxu0 0.0
    %339 = vmatprep.subr.mxu0 0.0
    %340 = vmatpush1.xpose.msra.mxu0 0.0
    %341 = vmatprep.subr.mxu0 0.0
    %342 = vmatpush1.xpose.msra.mxu0 0.0
    %343 = vmatprep.subr.mxu0 0.0
    %344 = vmatpush1.xpose.msra.mxu0 0.0
    %345 = vmatprep.subr.mxu0 0.0
    %346 = vmatpush1.xpose.msra.mxu0 0.0
    %347 = vmatprep.subr.mxu0 0.0
    %348 = vmatpush1.xpose.msra.mxu0 0.0
    %349 = vmatprep.subr.mxu0 0.0
    %350 = vmatpush1.xpose.msra.mxu0 0.0
    %351 = vmatprep.subr.mxu0 0.0
    %352 = vmatpush1.xpose.msra.mxu0 0.0
    %353 = vmatprep.subr.mxu0 0.0
    %354 = vmatpush1.xpose.msra.mxu0 0.0
    %355 = vmatprep.subr.mxu0 0.0
    %356 = vmatpush1.xpose.msra.mxu0 0.0
    %357 = vmatprep.subr.mxu0 0.0
    %358 = vmatpush1.xpose.msra.mxu0 0.0
    %359 = vmatprep.subr.mxu0 0.0
    %360 = vmatpush1.xpose.msra.mxu0 0.0
    %361 = vmatprep.subr.mxu0 0.0
    %362 = vmatpush1.xpose.msra.mxu0 0.0
    %363 = vmatprep.subr.mxu0 0.0
    %364 = vmatpush1.xpose.msra.mxu0 0.0
    %365 = vmatprep.subr.mxu0 0.0
    %366 = vmatpush1.xpose.msra.mxu0 0.0
    %367 = vmatprep.subr.mxu0 0.0
    %368 = vmatpush1.xpose.msra.mxu0 0.0
    %369 = vmatprep.subr.mxu0 0.0
    %370 = vmatpush1.xpose.msra.mxu0 0.0
    %371 = vmatprep.subr.mxu0 0.0
    %372 = vmatpush1.xpose.msra.mxu0 0.0
    %373 = vmatprep.subr.mxu0 0.0
    %374 = vmatpush1.xpose.msra.mxu0 0.0
    %375 = vmatprep.subr.mxu0 0.0
    %376 = vmatpush1.xpose.msra.mxu0 0.0
    %377 = vmatprep.subr.mxu0 0.0
    %378 = vmatpush1.xpose.msra.mxu0 0.0
    %379 = vmatprep.subr.mxu0 0.0
    %380 = vmatpush1.xpose.msra.mxu0 0.0
    %381 = vmatprep.subr.mxu0 0.0
    %382 = vmatpush1.xpose.msra.mxu0 0.0
    %383 = vmatprep.mubr.f32.mxu0 0.0
    %384 = vmatmul.mubr.f32.gmra.mrb[0].mxu0 %v315
    %v385 = vpop.f32.mrb[0].mxu0
    %v386 = vadd.f32 0.0, %v385
    %v387 = vpop.f32.mrb[0].mxu0
    %388 = vdwg.mxu0
    %389 = vrot.lane.b32.xlu0 %v159, 96
    %v390 = vpop.permute.xlu0 %389
    %v391 = vsel %vm162, %v159, 0
    %v393 = vsel %vm162, %v390, 0
    %395 = vmatprep.subr.mxu0 0.0
    %396 = vmatpush1.xpose.msra.mxu0 %v393
    %397 = vmatprep.subr.mxu0 0.0
    %398 = vmatpush1.xpose.msra.mxu0 0.0
    %399 = vmatprep.subr.mxu0 0.0
    %400 = vmatpush1.xpose.msra.mxu0 0.0
    %401 = vmatprep.subr.mxu0 0.0
    %402 = vmatpush1.xpose.msra.mxu0 0.0
    %403 = vmatprep.subr.mxu0 0.0
    %404 = vmatpush1.xpose.msra.mxu0 0.0
    %405 = vmatprep.subr.mxu0 0.0
    %406 = vmatpush1.xpose.msra.mxu0 0.0
    %407 = vmatprep.subr.mxu0 0.0
    %408 = vmatpush1.xpose.msra.mxu0 0.0
    %409 = vmatprep.subr.mxu0 0.0
    %410 = vmatpush1.xpose.msra.mxu0 0.0
    %411 = vmatprep.subr.mxu0 0.0
    %412 = vmatpush1.xpose.msra.mxu0 0.0
    %413 = vmatprep.subr.mxu0 0.0
    %414 = vmatpush1.xpose.msra.mxu0 0.0
    %415 = vmatprep.subr.mxu0 0.0
    %416 = vmatpush1.xpose.msra.mxu0 0.0
    %417 = vmatprep.subr.mxu0 0.0
    %418 = vmatpush1.xpose.msra.mxu0 0.0
    %419 = vmatprep.subr.mxu0 0.0
    %420 = vmatpush1.xpose.msra.mxu0 0.0
    %421 = vmatprep.subr.mxu0 0.0
    %422 = vmatpush1.xpose.msra.mxu0 0.0
    %423 = vmatprep.subr.mxu0 0.0
    %424 = vmatpush1.xpose.msra.mxu0 0.0
    %425 = vmatprep.subr.mxu0 0.0
    %426 = vmatpush1.xpose.msra.mxu0 0.0
    %427 = vmatprep.subr.mxu0 0.0
    %428 = vmatpush1.xpose.msra.mxu0 0.0
    %429 = vmatprep.subr.mxu0 0.0
    %430 = vmatpush1.xpose.msra.mxu0 0.0
    %431 = vmatprep.subr.mxu0 0.0
    %432 = vmatpush1.xpose.msra.mxu0 0.0
    %433 = vmatprep.subr.mxu0 0.0
    %434 = vmatpush1.xpose.msra.mxu0 0.0
    %435 = vmatprep.subr.mxu0 0.0
    %436 = vmatpush1.xpose.msra.mxu0 0.0
    %437 = vmatprep.subr.mxu0 0.0
    %438 = vmatpush1.xpose.msra.mxu0 0.0
    %439 = vmatprep.subr.mxu0 0.0
    %440 = vmatpush1.xpose.msra.mxu0 0.0
    %441 = vmatprep.subr.mxu0 0.0
    %442 = vmatpush1.xpose.msra.mxu0 0.0
    %443 = vmatprep.subr.mxu0 0.0
    %444 = vmatpush1.xpose.msra.mxu0 0.0
    %445 = vmatprep.subr.mxu0 0.0
    %446 = vmatpush1.xpose.msra.mxu0 0.0
    %447 = vmatprep.subr.mxu0 0.0
    %448 = vmatpush1.xpose.msra.mxu0 0.0
    %449 = vmatprep.subr.mxu0 0.0
    %450 = vmatpush1.xpose.msra.mxu0 0.0
    %451 = vmatprep.subr.mxu0 0.0
    %452 = vmatpush1.xpose.msra.mxu0 0.0
    %453 = vmatprep.subr.mxu0 0.0
    %454 = vmatpush1.xpose.msra.mxu0 0.0
    %455 = vmatprep.subr.mxu0 0.0
    %456 = vmatpush1.xpose.msra.mxu0 0.0
    %457 = vmatprep.subr.mxu0 0.0
    %458 = vmatpush1.xpose.msra.mxu0 0.0
    %459 = vmatprep.mubr.f32.mxu0 0.0
    %460 = vmatmul.mubr.f32.gmra.mrb[0].mxu0 %v391
    %v461 = vpop.f32.mrb[0].mxu0
    %v462 = vadd.f32 0.0, %v461
    %v463 = vpop.f32.mrb[0].mxu0
    %464 = vdwg.mxu0
    %v465 = vsel %vm162, %v234, -inf
    %466 = vmax.xlane.f32.xlu0 %v465
    %v467 = vpop.xlane.xlu0 %466
    %v468 = vsel %vm162, %v310, -inf
    %469 = vmax.xlane.f32.xlu0 %v468
    %v470 = vpop.xlane.xlu0 %469
    %v471 = vsel %vm162, %v386, -inf
    %472 = vmax.xlane.f32.xlu0 %v471
    %v473 = vpop.xlane.xlu0 %472
    %v474 = vsel %vm162, %v462, -inf
    %475 = vmax.xlane.f32.xlu0 %v474
    %v476 = vpop.xlane.xlu0 %475
    %v477 = vsub.f32 %v234, %v467
    %v478 = vsub.f32 %v310, %v470
    %v479 = vsub.f32 %v386, %v473
    %v480 = vsub.f32 %v462, %v476
    %v481 = vmul.f32 %v477, 1.442695
    %v482 = vpow.pop %v481
    %v483 = vmul.f32 %v478, 1.442695
    %v484 = vpow.pop %v483
    %v485 = vmul.f32 %v479, 1.442695
    %v486 = vpow.pop %v485
    %v487 = vmul.f32 %v480, 1.442695
    %v488 = vpow.pop %v487
    %v489 = vsel %vm162, %v482, 0.0
    %490 = vadd.xlane.f32.xlu0 %v489
    %v491 = vpop.xlane.xlu0 %490
    %v492 = vsel %vm162, %v484, 0.0
    %493 = vadd.xlane.f32.xlu0 %v492
    %v494 = vpop.xlane.xlu0 %493
    %v495 = vsel %vm162, %v486, 0.0
    %496 = vadd.xlane.f32.xlu0 %v495
    %v497 = vpop.xlane.xlu0 %496
    %v498 = vsel %vm162, %v488, 0.0
    %499 = vadd.xlane.f32.xlu0 %v498
    %v500 = vpop.xlane.xlu0 %499
    %v501 = vrcp.pop %v491
    %v502 = vrcp.pop %v494
    %v503 = vrcp.pop %v497
    %v504 = vrcp.pop %v500
    %v505 = vmul.f32 %v482, %v501
    %v506 = vmul.f32 %v484, %v502
    %v507 = vmul.f32 %v486, %v503
    %v508 = vmul.f32 %v488, %v504
    %v509 = vsel %vm162, %v505, 0.0
    %v510 = vsel %vm162, %v506, 0.0
    %v511 = vadd.f32 %v509, %v510
    %v512 = vsel %vm162, %v507, 0.0
    %v513 = vadd.f32 %v511, %v512
    %v514 = vsel %vm162, %v508, 0.0
    %v515 = vadd.f32 %v513, %v514
    %v516 = vmul.f32 %v515, 0.25
    %517 = vrot.lane.b32.xlu0 %v150, 64
    %v518 = vpop.permute.xlu0 %517
    %v521 = vsel %vm162, %v505, 0
    %523 = vmatprep.subr.mxu0 0.0
    %524 = vmatpush1.msra.mxu0 %v518
    %525 = vmatprep.subr.mxu0 0.0
    %526 = vmatpush1.msra.mxu0 0.0
    %527 = vmatprep.subr.mxu0 0.0
    %528 = vmatpush1.msra.mxu0 0.0
    %529 = vmatprep.subr.mxu0 0.0
    %530 = vmatpush1.msra.mxu0 0.0
    %531 = vmatprep.subr.mxu0 0.0
    %532 = vmatpush1.msra.mxu0 0.0
    %533 = vmatprep.subr.mxu0 0.0
    %534 = vmatpush1.msra.mxu0 0.0
    %535 = vmatprep.subr.mxu0 0.0
    %536 = vmatpush1.msra.mxu0 0.0
    %537 = vmatprep.subr.mxu0 0.0
    %538 = vmatpush1.msra.mxu0 0.0
    %539 = vmatprep.subr.mxu0 0.0
    %540 = vmatpush1.msra.mxu0 0.0
    %541 = vmatprep.subr.mxu0 0.0
    %542 = vmatpush1.msra.mxu0 0.0
    %543 = vmatprep.subr.mxu0 0.0
    %544 = vmatpush1.msra.mxu0 0.0
    %545 = vmatprep.subr.mxu0 0.0
    %546 = vmatpush1.msra.mxu0 0.0
    %547 = vmatprep.subr.mxu0 0.0
    %548 = vmatpush1.msra.mxu0 0.0
    %549 = vmatprep.subr.mxu0 0.0
    %550 = vmatpush1.msra.mxu0 0.0
    %551 = vmatprep.subr.mxu0 0.0
    %552 = vmatpush1.msra.mxu0 0.0
    %553 = vmatprep.subr.mxu0 0.0
    %554 = vmatpush1.msra.mxu0 0.0
    %555 = vmatprep.subr.mxu0 0.0
    %556 = vmatpush1.msra.mxu0 0.0
    %557 = vmatprep.subr.mxu0 0.0
    %558 = vmatpush1.msra.mxu0 0.0
    %559 = vmatprep.subr.mxu0 0.0
    %560 = vmatpush1.msra.mxu0 0.0
    %561 = vmatprep.subr.mxu0 0.0
    %562 = vmatpush1.msra.mxu0 0.0
    %563 = vmatprep.subr.mxu0 0.0
    %564 = vmatpush1.msra.mxu0 0.0
    %565 = vmatprep.subr.mxu0 0.0
    %566 = vmatpush1.msra.mxu0 0.0
    %567 = vmatprep.subr.mxu0 0.0
    %568 = vmatpush1.msra.mxu0 0.0
    %569 = vmatprep.subr.mxu0 0.0
    %570 = vmatpush1.msra.mxu0 0.0
    %571 = vmatprep.subr.mxu0 0.0
    %572 = vmatpush1.msra.mxu0 0.0
    %573 = vmatprep.subr.mxu0 0.0
    %574 = vmatpush1.msra.mxu0 0.0
    %575 = vmatprep.subr.mxu0 0.0
    %576 = vmatpush1.msra.mxu0 0.0
    %577 = vmatprep.subr.mxu0 0.0
    %578 = vmatpush1.msra.mxu0 0.0
    %579 = vmatprep.subr.mxu0 0.0
    %580 = vmatpush1.msra.mxu0 0.0
    %581 = vmatprep.subr.mxu0 0.0
    %582 = vmatpush1.msra.mxu0 0.0
    %583 = vmatprep.subr.mxu0 0.0
    %584 = vmatpush1.msra.mxu0 0.0
    %585 = vmatprep.subr.mxu0 0.0
    %586 = vmatpush1.msra.mxu0 0.0
    %587 = vmatprep.mubr.f32.mxu0 0.0
    %588 = vmatmul.mubr.f32.gmra.mrb[0].mxu0 %v521
    %v589 = vpop.f32.mrb[0].mxu0
    %v590 = vadd.f32 0.0, %v589
    %v591 = vpop.f32.mrb[0].mxu0
    %592 = vdwg.mxu0
    %593 = vrot.lane.b32.xlu0 %v155, 64
    %v594 = vpop.permute.xlu0 %593
    %v597 = vsel %vm162, %v506, 0
    %599 = vmatprep.subr.mxu0 0.0
    %600 = vmatpush1.msra.mxu0 %v594
    %601 = vmatprep.subr.mxu0 0.0
    %602 = vmatpush1.msra.mxu0 0.0
    %603 = vmatprep.subr.mxu0 0.0
    %604 = vmatpush1.msra.mxu0 0.0
    %605 = vmatprep.subr.mxu0 0.0
    %606 = vmatpush1.msra.mxu0 0.0
    %607 = vmatprep.subr.mxu0 0.0
    %608 = vmatpush1.msra.mxu0 0.0
    %609 = vmatprep.subr.mxu0 0.0
    %610 = vmatpush1.msra.mxu0 0.0
    %611 = vmatprep.subr.mxu0 0.0
    %612 = vmatpush1.msra.mxu0 0.0
    %613 = vmatprep.subr.mxu0 0.0
    %614 = vmatpush1.msra.mxu0 0.0
    %615 = vmatprep.subr.mxu0 0.0
    %616 = vmatpush1.msra.mxu0 0.0
    %617 = vmatprep.subr.mxu0 0.0
    %618 = vmatpush1.msra.mxu0 0.0
    %619 = vmatprep.subr.mxu0 0.0
    %620 = vmatpush1.msra.mxu0 0.0
    %621 = vmatprep.subr.mxu0 0.0
    %622 = vmatpush1.msra.mxu0 0.0
    %623 = vmatprep.subr.mxu0 0.0
    %624 = vmatpush1.msra.mxu0 0.0
    %625 = vmatprep.subr.mxu0 0.0
    %626 = vmatpush1.msra.mxu0 0.0
    %627 = vmatprep.subr.mxu0 0.0
    %628 = vmatpush1.msra.mxu0 0.0
    %629 = vmatprep.subr.mxu0 0.0
    %630 = vmatpush1.msra.mxu0 0.0
    %631 = vmatprep.subr.mxu0 0.0
    %632 = vmatpush1.msra.mxu0 0.0
    %633 = vmatprep.subr.mxu0 0.0
    %634 = vmatpush1.msra.mxu0 0.0
    %635 = vmatprep.subr.mxu0 0.0
    %636 = vmatpush1.msra.mxu0 0.0
    %637 = vmatprep.subr.mxu0 0.0
    %638 = vmatpush1.msra.mxu0 0.0
    %639 = vmatprep.subr.mxu0 0.0
    %640 = vmatpush1.msra.mxu0 0.0
    %641 = vmatprep.subr.mxu0 0.0
    %642 = vmatpush1.msra.mxu0 0.0
    %643 = vmatprep.subr.mxu0 0.0
    %644 = vmatpush1.msra.mxu0 0.0
    %645 = vmatprep.subr.mxu0 0.0
    %646 = vmatpush1.msra.mxu0 0.0
    %647 = vmatprep.subr.mxu0 0.0
    %648 = vmatpush1.msra.mxu0 0.0
    %649 = vmatprep.subr.mxu0 0.0
    %650 = vmatpush1.msra.mxu0 0.0
    %651 = vmatprep.subr.mxu0 0.0
    %652 = vmatpush1.msra.mxu0 0.0
    %653 = vmatprep.subr.mxu0 0.0
    %654 = vmatpush1.msra.mxu0 0.0
    %655 = vmatprep.subr.mxu0 0.0
    %656 = vmatpush1.msra.mxu0 0.0
    %657 = vmatprep.subr.mxu0 0.0
    %658 = vmatpush1.msra.mxu0 0.0
    %659 = vmatprep.subr.mxu0 0.0
    %660 = vmatpush1.msra.mxu0 0.0
    %661 = vmatprep.subr.mxu0 0.0
    %662 = vmatpush1.msra.mxu0 0.0
    %663 = vmatprep.mubr.f32.mxu0 0.0
    %664 = vmatmul.mubr.f32.gmra.mrb[0].mxu0 %v597
    %v665 = vpop.f32.mrb[0].mxu0
    %v666 = vadd.f32 0.0, %v665
    %v667 = vpop.f32.mrb[0].mxu0
    %668 = vdwg.mxu0
    %669 = vrot.lane.b32.xlu0 %v157, 64
    %v670 = vpop.permute.xlu0 %669
    %v673 = vsel %vm162, %v507, 0
    %675 = vmatprep.subr.mxu0 0.0
    %676 = vmatpush1.msra.mxu0 %v670
    %677 = vmatprep.subr.mxu0 0.0
    %678 = vmatpush1.msra.mxu0 0.0
    %679 = vmatprep.subr.mxu0 0.0
    %680 = vmatpush1.msra.mxu0 0.0
    %681 = vmatprep.subr.mxu0 0.0
    %682 = vmatpush1.msra.mxu0 0.0
    %683 = vmatprep.subr.mxu0 0.0
    %684 = vmatpush1.msra.mxu0 0.0
    %685 = vmatprep.subr.mxu0 0.0
    %686 = vmatpush1.msra.mxu0 0.0
    %687 = vmatprep.subr.mxu0 0.0
    %688 = vmatpush1.msra.mxu0 0.0
    %689 = vmatprep.subr.mxu0 0.0
    %690 = vmatpush1.msra.mxu0 0.0
    %691 = vmatprep.subr.mxu0 0.0
    %692 = vmatpush1.msra.mxu0 0.0
    %693 = vmatprep.subr.mxu0 0.0
    %694 = vmatpush1.msra.mxu0 0.0
    %695 = vmatprep.subr.mxu0 0.0
    %696 = vmatpush1.msra.mxu0 0.0
    %697 = vmatprep.subr.mxu0 0.0
    %698 = vmatpush1.msra.mxu0 0.0
    %699 = vmatprep.subr.mxu0 0.0
    %700 = vmatpush1.msra.mxu0 0.0
    %701 = vmatprep.subr.mxu0 0.0
    %702 = vmatpush1.msra.mxu0 0.0
    %703 = vmatprep.subr.mxu0 0.0
    %704 = vmatpush1.msra.mxu0 0.0
    %705 = vmatprep.subr.mxu0 0.0
    %706 = vmatpush1.msra.mxu0 0.0
    %707 = vmatprep.subr.mxu0 0.0
    %708 = vmatpush1.msra.mxu0 0.0
    %709 = vmatprep.subr.mxu0 0.0
    %710 = vmatpush1.msra.mxu0 0.0
    %711 = vmatprep.subr.mxu0 0.0
    %712 = vmatpush1.msra.mxu0 0.0
    %713 = vmatprep.subr.mxu0 0.0
    %714 = vmatpush1.msra.mxu0 0.0
    %715 = vmatprep.subr.mxu0 0.0
    %716 = vmatpush1.msra.mxu0 0.0
    %717 = vmatprep.subr.mxu0 0.0
    %718 = vmatpush1.msra.mxu0 0.0
    %719 = vmatprep.subr.mxu0 0.0
    %720 = vmatpush1.msra.mxu0 0.0
    %721 = vmatprep.subr.mxu0 0.0
    %722 = vmatpush1.msra.mxu0 0.0
    %723 = vmatprep.subr.mxu0 0.0
    %724 = vmatpush1.msra.mxu0 0.0
    %725 = vmatprep.subr.mxu0 0.0
    %726 = vmatpush1.msra.mxu0 0.0
    %727 = vmatprep.subr.mxu0 0.0
    %728 = vmatpush1.msra.mxu0 0.0
    %729 = vmatprep.subr.mxu0 0.0
    %730 = vmatpush1.msra.mxu0 0.0
    %731 = vmatprep.subr.mxu0 0.0
    %732 = vmatpush1.msra.mxu0 0.0
    %733 = vmatprep.subr.mxu0 0.0
    %734 = vmatpush1.msra.mxu0 0.0
    %735 = vmatprep.subr.mxu0 0.0
    %736 = vmatpush1.msra.mxu0 0.0
    %737 = vmatprep.subr.mxu0 0.0
    %738 = vmatpush1.msra.mxu0 0.0
    %739 = vmatprep.mubr.f32.mxu0 0.0
    %740 = vmatmul.mubr.f32.gmra.mrb[0].mxu0 %v673
    %v741 = vpop.f32.mrb[0].mxu0
    %v742 = vadd.f32 0.0, %v741
    %v743 = vpop.f32.mrb[0].mxu0
    %744 = vdwg.mxu0
    %745 = vrot.lane.b32.xlu0 %v159, 64
    %v746 = vpop.permute.xlu0 %745
    %v749 = vsel %vm162, %v508, 0
    %751 = vmatprep.subr.mxu0 0.0
    %752 = vmatpush1.msra.mxu0 %v746
    %753 = vmatprep.subr.mxu0 0.0
    %754 = vmatpush1.msra.mxu0 0.0
    %755 = vmatprep.subr.mxu0 0.0
    %756 = vmatpush1.msra.mxu0 0.0
    %757 = vmatprep.subr.mxu0 0.0
    %758 = vmatpush1.msra.mxu0 0.0
    %759 = vmatprep.subr.mxu0 0.0
    %760 = vmatpush1.msra.mxu0 0.0
    %761 = vmatprep.subr.mxu0 0.0
    %762 = vmatpush1.msra.mxu0 0.0
    %763 = vmatprep.subr.mxu0 0.0
    %764 = vmatpush1.msra.mxu0 0.0
    %765 = vmatprep.subr.mxu0 0.0
    %766 = vmatpush1.msra.mxu0 0.0
    %767 = vmatprep.subr.mxu0 0.0
    %768 = vmatpush1.msra.mxu0 0.0
    %769 = vmatprep.subr.mxu0 0.0
    %770 = vmatpush1.msra.mxu0 0.0
    %771 = vmatprep.subr.mxu0 0.0
    %772 = vmatpush1.msra.mxu0 0.0
    %773 = vmatprep.subr.mxu0 0.0
    %774 = vmatpush1.msra.mxu0 0.0
    %775 = vmatprep.subr.mxu0 0.0
    %776 = vmatpush1.msra.mxu0 0.0
    %777 = vmatprep.subr.mxu0 0.0
    %778 = vmatpush1.msra.mxu0 0.0
    %779 = vmatprep.subr.mxu0 0.0
    %780 = vmatpush1.msra.mxu0 0.0
    %781 = vmatprep.subr.mxu0 0.0
    %782 = vmatpush1.msra.mxu0 0.0
    %783 = vmatprep.subr.mxu0 0.0
    %784 = vmatpush1.msra.mxu0 0.0
    %785 = vmatprep.subr.mxu0 0.0
    %786 = vmatpush1.msra.mxu0 0.0
    %787 = vmatprep.subr.mxu0 0.0
    %788 = vmatpush1.msra.mxu0 0.0
    %789 = vmatprep.subr.mxu0 0.0
    %790 = vmatpush1.msra.mxu0 0.0
    %791 = vmatprep.subr.mxu0 0.0
    %792 = vmatpush1.msra.mxu0 0.0
    %793 = vmatprep.subr.mxu0 0.0
    %794 = vmatpush1.msra.mxu0 0.0
    %795 = vmatprep.subr.mxu0 0.0
    %796 = vmatpush1.msra.mxu0 0.0
    %797 = vmatprep.subr.mxu0 0.0
    %798 = vmatpush1.msra.mxu0 0.0
    %799 = vmatprep.subr.mxu0 0.0
    %800 = vmatpush1.msra.mxu0 0.0
    %801 = vmatprep.subr.mxu0 0.0
    %802 = vmatpush1.msra.mxu0 0.0
    %803 = vmatprep.subr.mxu0 0.0
    %804 = vmatpush1.msra.mxu0 0.0
    %805 = vmatprep.subr.mxu0 0.0
    %806 = vmatpush1.msra.mxu0 0.0
    %807 = vmatprep.subr.mxu0 0.0
    %808 = vmatpush1.msra.mxu0 0.0
    %809 = vmatprep.subr.mxu0 0.0
    %810 = vmatpush1.msra.mxu0 0.0
    %811 = vmatprep.subr.mxu0 0.0
    %812 = vmatpush1.msra.mxu0 0.0
    %813 = vmatprep.subr.mxu0 0.0
    %814 = vmatpush1.msra.mxu0 0.0
    %815 = vmatprep.mubr.f32.mxu0 0.0
    %816 = vmatmul.mubr.f32.gmra.mrb[0].mxu0 %v749
    %v817 = vpop.f32.mrb[0].mxu0
    %v818 = vadd.f32 0.0, %v817
    %v819 = vpop.f32.mrb[0].mxu0
    %820 = vdwg.mxu0
    %822 = vrot.lane.b32.xlu0 %v666, 8
    %v823 = vpop.permute.xlu0 %822
    %826 = vrot.lane.b32.xlu0 %v742, 16
    %v827 = vpop.permute.xlu0 %826
    %830 = vrot.lane.b32.xlu0 %v818, 24
    %v831 = vpop.permute.xlu0 %830
    %v833 = vsel %vm162, %v590, %v823
    %vm834 = vcmask 130048
    %v835 = vsel %vm834, %v833, %v827
    %vm836 = vcmask 195584
    %v837 = vsel %vm836, %v835, %v831
    %v838 = vld [vmem:[#allocation8] sm:$0xff]
    %v839 = vld [vmem:[#allocation8 + $0x8] sm:$0xff]
    %v840 = vld [vmem:[#allocation8 + $0x10] sm:$0xff]
    %v841 = vld [vmem:[#allocation8 + $0x18] sm:$0xff]
    %v842 = vld [vmem:[%s4] sm:$0x1]
    %v844 = vlaneseq
    %v845 = vshrl.u32 %v844, 7
    %v846 = vsub.s32 0, %v845
    %v847 = vrot.slane %v842, %v846
    %v850 = vsel %vm79, %v837, 0
    %852 = vmatprep.subr.mxu0 0.0
    %853 = vmatpush1.msra.mxu0 %v838
    %854 = vmatprep.subr.mxu0 0.0
    %855 = vmatpush1.msra.mxu0 %v839
    %856 = vmatprep.subr.mxu0 0.0
    %857 = vmatpush1.msra.mxu0 %v840
    %858 = vmatprep.subr.mxu0 0.0
    %859 = vmatpush1.msra.mxu0 %v841
    %860 = vmatprep.subr.mxu0 0.0
    %861 = vmatpush1.msra.mxu0 0.0
    %862 = vmatprep.subr.mxu0 0.0
    %863 = vmatpush1.msra.mxu0 0.0
    %864 = vmatprep.subr.mxu0 0.0
    %865 = vmatpush1.msra.mxu0 0.0
    %866 = vmatprep.subr.mxu0 0.0
    %867 = vmatpush1.msra.mxu0 0.0
    %868 = vmatprep.subr.mxu0 0.0
    %869 = vmatpush1.msra.mxu0 0.0
    %870 = vmatprep.subr.mxu0 0.0
    %871 = vmatpush1.msra.mxu0 0.0
    %872 = vmatprep.subr.mxu0 0.0
    %873 = vmatpush1.msra.mxu0 0.0
    %874 = vmatprep.subr.mxu0 0.0
    %875 = vmatpush1.msra.mxu0 0.0
    %876 = vmatprep.subr.mxu0 0.0
    %877 = vmatpush1.msra.mxu0 0.0
    %878 = vmatprep.subr.mxu0 0.0
    %879 = vmatpush1.msra.mxu0 0.0
    %880 = vmatprep.subr.mxu0 0.0
    %881 = vmatpush1.msra.mxu0 0.0
    %882 = vmatprep.subr.mxu0 0.0
    %883 = vmatpush1.msra.mxu0 0.0
    %884 = vmatprep.subr.mxu0 0.0
    %885 = vmatpush1.msra.mxu0 0.0
    %886 = vmatprep.subr.mxu0 0.0
    %887 = vmatpush1.msra.mxu0 0.0
    %888 = vmatprep.subr.mxu0 0.0
    %889 = vmatpush1.msra.mxu0 0.0
    %890 = vmatprep.subr.mxu0 0.0
    %891 = vmatpush1.msra.mxu0 0.0
    %892 = vmatprep.subr.mxu0 0.0
    %893 = vmatpush1.msra.mxu0 0.0
    %894 = vmatprep.subr.mxu0 0.0
    %895 = vmatpush1.msra.mxu0 0.0
    %896 = vmatprep.subr.mxu0 0.0
    %897 = vmatpush1.msra.mxu0 0.0
    %898 = vmatprep.subr.mxu0 0.0
    %899 = vmatpush1.msra.mxu0 0.0
    %900 = vmatprep.subr.mxu0 0.0
    %901 = vmatpush1.msra.mxu0 0.0
    %902 = vmatprep.subr.mxu0 0.0
    %903 = vmatpush1.msra.mxu0 0.0
    %904 = vmatprep.subr.mxu0 0.0
    %905 = vmatpush1.msra.mxu0 0.0
    %906 = vmatprep.subr.mxu0 0.0
    %907 = vmatpush1.msra.mxu0 0.0
    %908 = vmatprep.subr.mxu0 0.0
    %909 = vmatpush1.msra.mxu0 0.0
    %910 = vmatprep.subr.mxu0 0.0
    %911 = vmatpush1.msra.mxu0 0.0
    %912 = vmatprep.subr.mxu0 0.0
    %913 = vmatpush1.msra.mxu0 0.0
    %914 = vmatprep.subr.mxu0 0.0
    %915 = vmatpush1.msra.mxu0 0.0
    %916 = vmatprep.mubr.f32.mxu0 0.0
    %917 = vmatmul.mubr.f32.gmra.mrb[0].mxu0 %v850
    %v918 = vpop.f32.mrb[0].mxu0
    %v919 = vadd.f32 %v847, %v918
    %v920 = vpop.f32.mrb[0].mxu0
    %921 = vdwg.mxu0
    %v922 = vld [vmem:[%s5] sm:$0x7]
    %v924 = vsel %vm162, %v922, 0
    %926 = vmatprep.subr.mxu0 0.0
    %927 = vmatpush1.msra.mxu0 %v516
    %928 = vmatprep.subr.mxu0 0.0
    %929 = vmatpush1.msra.mxu0 0.0
    %930 = vmatprep.subr.mxu0 0.0
    %931 = vmatpush1.msra.mxu0 0.0
    %932 = vmatprep.subr.mxu0 0.0
    %933 = vmatpush1.msra.mxu0 0.0
    %934 = vmatprep.subr.mxu0 0.0
    %935 = vmatpush1.msra.mxu0 0.0
    %936 = vmatprep.subr.mxu0 0.0
    %937 = vmatpush1.msra.mxu0 0.0
    %938 = vmatprep.subr.mxu0 0.0
    %939 = vmatpush1.msra.mxu0 0.0
    %940 = vmatprep.subr.mxu0 0.0
    %941 = vmatpush1.msra.mxu0 0.0
    %942 = vmatprep.subr.mxu0 0.0
    %943 = vmatpush1.msra.mxu0 0.0
    %944 = vmatprep.subr.mxu0 0.0
    %945 = vmatpush1.msra.mxu0 0.0
    %946 = vmatprep.subr.mxu0 0.0
    %947 = vmatpush1.msra.mxu0 0.0
    %948 = vmatprep.subr.mxu0 0.0
    %949 = vmatpush1.msra.mxu0 0.0
    %950 = vmatprep.subr.mxu0 0.0
    %951 = vmatpush1.msra.mxu0 0.0
    %952 = vmatprep.subr.mxu0 0.0
    %953 = vmatpush1.msra.mxu0 0.0
    %954 = vmatprep.subr.mxu0 0.0
    %955 = vmatpush1.msra.mxu0 0.0
    %956 = vmatprep.subr.mxu0 0.0
    %957 = vmatpush1.msra.mxu0 0.0
    %958 = vmatprep.subr.mxu0 0.0
    %959 = vmatpush1.msra.mxu0 0.0
    %960 = vmatprep.subr.mxu0 0.0
    %961 = vmatpush1.msra.mxu0 0.0
    %962 = vmatprep.subr.mxu0 0.0
    %963 = vmatpush1.msra.mxu0 0.0
    %964 = vmatprep.subr.mxu0 0.0
    %965 = vmatpush1.msra.mxu0 0.0
    %966 = vmatprep.subr.mxu0 0.0
    %967 = vmatpush1.msra.mxu0 0.0
    %968 = vmatprep.subr.mxu0 0.0
    %969 = vmatpush1.msra.mxu0 0.0
    %970 = vmatprep.subr.mxu0 0.0
    %971 = vmatpush1.msra.mxu0 0.0
    %972 = vmatprep.subr.mxu0 0.0
    %973 = vmatpush1.msra.mxu0 0.0
    %974 = vmatprep.subr.mxu0 0.0
    %975 = vmatpush1.msra.mxu0 0.0
    %976 = vmatprep.subr.mxu0 0.0
    %977 = vmatpush1.msra.mxu0 0.0
    %978 = vmatprep.subr.mxu0 0.0
    %979 = vmatpush1.msra.mxu0 0.0
    %980 = vmatprep.subr.mxu0 0.0
    %981 = vmatpush1.msra.mxu0 0.0
    %982 = vmatprep.subr.mxu0 0.0
    %983 = vmatpush1.msra.mxu0 0.0
    %984 = vmatprep.subr.mxu0 0.0
    %985 = vmatpush1.msra.mxu0 0.0
    %986 = vmatprep.subr.mxu0 0.0
    %987 = vmatpush1.msra.mxu0 0.0
    %988 = vmatprep.subr.mxu0 0.0
    %989 = vmatpush1.msra.mxu0 0.0
    %990 = vmatprep.mubr.f32.mxu0 0.0
    %991 = vmatmul.mubr.f32.gmra.mrb[0].mxu0 %v924
    %v992 = vpop.f32.mrb[0].mxu0
    %v993 = vadd.f32 0.0, %v992
    %v994 = vpop.f32.mrb[0].mxu0
    %995 = vdwg.mxu0
    %v997 = vsel %vm162, %v993, 0
    %999 = vmatprep.subr.mxu0 0.0
    %1000 = vmatpush1.msra.mxu0 %v919
    %1001 = vmatprep.subr.mxu0 0.0
    %1002 = vmatpush1.msra.mxu0 0.0
    %1003 = vmatprep.subr.mxu0 0.0
    %1004 = vmatpush1.msra.mxu0 0.0
    %1005 = vmatprep.subr.mxu0 0.0
    %1006 = vmatpush1.msra.mxu0 0.0
    %1007 = vmatprep.subr.mxu0 0.0
    %1008 = vmatpush1.msra.mxu0 0.0
    %1009 = vmatprep.subr.mxu0 0.0
    %1010 = vmatpush1.msra.mxu0 0.0
    %1011 = vmatprep.subr.mxu0 0.0
    %1012 = vmatpush1.msra.mxu0 0.0
    %1013 = vmatprep.subr.mxu0 0.0
    %1014 = vmatpush1.msra.mxu0 0.0
    %1015 = vmatprep.subr.mxu0 0.0
    %1016 = vmatpush1.msra.mxu0 0.0
    %1017 = vmatprep.subr.mxu0 0.0
    %1018 = vmatpush1.msra.mxu0 0.0
    %1019 = vmatprep.subr.mxu0 0.0
    %1020 = vmatpush1.msra.mxu0 0.0
    %1021 = vmatprep.subr.mxu0 0.0
    %1022 = vmatpush1.msra.mxu0 0.0
    %1023 = vmatprep.subr.mxu0 0.0
    %1024 = vmatpush1.msra.mxu0 0.0
    %1025 = vmatprep.subr.mxu0 0.0
    %1026 = vmatpush1.msra.mxu0 0.0
    %1027 = vmatprep.subr.mxu0 0.0
    %1028 = vmatpush1.msra.mxu0 0.0
    %1029 = vmatprep.subr.mxu0 0.0
    %1030 = vmatpush1.msra.mxu0 0.0
    %1031 = vmatprep.subr.mxu0 0.0
    %1032 = vmatpush1.msra.mxu0 0.0
    %1033 = vmatprep.subr.mxu0 0.0
    %1034 = vmatpush1.msra.mxu0 0.0
    %1035 = vmatprep.subr.mxu0 0.0
    %1036 = vmatpush1.msra.mxu0 0.0
    %1037 = vmatprep.subr.mxu0 0.0
    %1038 = vmatpush1.msra.mxu0 0.0
    %1039 = vmatprep.subr.mxu0 0.0
    %1040 = vmatpush1.msra.mxu0 0.0
    %1041 = vmatprep.subr.mxu0 0.0
    %1042 = vmatpush1.msra.mxu0 0.0
    %1043 = vmatprep.subr.mxu0 0.0
    %1044 = vmatpush1.msra.mxu0 0.0
    %1045 = vmatprep.subr.mxu0 0.0
    %1046 = vmatpush1.msra.mxu0 0.0
    %1047 = vmatprep.subr.mxu0 0.0
    %1048 = vmatpush1.msra.mxu0 0.0
    %1049 = vmatprep.subr.mxu0 0.0
    %1050 = vmatpush1.msra.mxu0 0.0
    %1051 = vmatprep.subr.mxu0 0.0
    %1052 = vmatpush1.msra.mxu0 0.0
    %1053 = vmatprep.subr.mxu0 0.0
    %1054 = vmatpush1.msra.mxu0 0.0
    %1055 = vmatprep.subr.mxu0 0.0
    %1056 = vmatpush1.msra.mxu0 0.0
    %1057 = vmatprep.subr.mxu0 0.0
    %1058 = vmatpush1.msra.mxu0 0.0
    %1059 = vmatprep.subr.mxu0 0.0
    %1060 = vmatpush1.msra.mxu0 0.0
    %1061 = vmatprep.subr.mxu0 0.0
    %1062 = vmatpush1.msra.mxu0 0.0
    %1063 = vmatprep.mubr.f32.mxu0 0.0
    %1064 = vmatmul.mubr.f32.gmra.mrb[0].mxu0 %v997
    %v1065 = vpop.f32.mrb[0].mxu0
    %v1066 = vadd.f32 0.0, %v1065
    %v1067 = vpop.f32.mrb[0].mxu0
    %1068 = vdwg.mxu0
    %1070 = vrot.lane.b32.xlu0 %v1066, 1
    %v1071 = vpop.permute.xlu0 %1070
    %vm1073 = vcmask 7168
    %v1074 = vsel %vm1073, 0.0, %v1071
    %1075 = vrot.lane.b32.xlu0 %v1066, 127
    %v1076 = vpop.permute.xlu0 %1075
    %vm1078 = vcmask 252928
    %v1079 = vsel %vm1078, %v1076, 0.0
    %v1081 = vrot.slane %v1074, 7
    %v1083 = vadd.f32 %v1066, %v1081
    %v1085 = vrot.slane %v1079, 1
    %v1087 = vadd.f32 %v1083, %v1085
    %s1088 = sld [smem:[#allocation2]]
    %v1089 = vstv %s1088
    %v1090 = vadd.f32 %v1087, %v1089
    %vm1091 = vcmask 254977
    %1092 = vst.msk [vmem:[#allocation9 - $0x1] sm:$0x2] %vm1091, %v1090
    // Predicated region
    $region42: #{tpu_custom_call.1} parent=1 // pred_check
      _
    $region43: #{tpu_custom_call.1} parent=1 // pred_check_branch
      %1094 = sbr.rel (0) target = $region45
    $region44: #{tpu_custom_call.1} parent=1 // pred_region
      %s1096 = ssub.s32 16, 16
      %1097 = vsyncadd [#allocation5], %s1096
      %s1099 = sshll.u32 [#allocation9], 4
      %s1100 = int_to_ptr.vmem [resolvable:$true] %s1099
      %1102 = dma.vmem_to_hbm [thread:$0]  %s1100, 16, %s7, [#allocation5]
    $region45: #{tpu_custom_call.1} parent=1 // pred_fallthru
      _
    // Predicated region
    $region46: #{tpu_custom_call.1} parent=1 // pred_check
      _
    $region47: #{tpu_custom_call.1} parent=1 // pred_check_branch
      %1104 = sbr.rel (0) target = $region49
    $region48: #{tpu_custom_call.1} parent=1 // pred_region
      %1105 = dma.done [#allocation5], 16
    $region49: #{tpu_custom_call.1} parent=1 // pred_fallthru
      _
    %1106 = vsyncpa [#allocation4], 1
    %1107 = vsyncpa [#allocation7], 1
    %1108 = vsyncpa [#allocation5], 1

</llo_original>
